<compile_context>
chip_gen: v5e
topology: v5e:2x2
jax: 0.10.0
libtpu: 0.0.40
codegen_flags: <defaults>
</compile_context>

<pallas_src>
import jax
import jax.numpy as jnp
from jax.experimental import pallas as pl
from jax.experimental.pallas import tpu as pltpu


def _drop_path_kernel(x_ref, scale_ref, o_ref):
    # scale_ref is (tm, 1): 0 or 1/keep_prob per sample, in x's dtype.
    # Single multiply; sublane vector broadcasts over the lane dimension.
    o_ref[...] = x_ref[...] * scale_ref[...]


def _vmem_capacity_bytes():
    try:
        return int(pltpu.get_tpu_info().vmem_capacity_bytes)
    except Exception:
        # Conservative default: v7x per-TensorCore VMEM.
        return 64 * 1024 * 1024


def drop_path(x, drop_prob, *, training=True, seed=0,
              block_rows=None, block_cols=None):
    """Pallas TPU implementation of DropPath.forward."""
    if drop_prob == 0.0 or not training:
        return x  # identity path, exactly like the PyTorch module
    keep_prob = 1.0 - float(drop_prob)

    B = x.shape[0]
    N = 1
    for d in x.shape[1:]:
        N *= int(d)
    N = max(N, 1)
    x2 = x.reshape(B, N)
    itemsize = jnp.dtype(x.dtype).itemsize

    # Per-sample keep/scale vector computed once outside the kernel: removes
    # all PRNG work from the kernel; added HBM traffic is only B*itemsize.
    key = jax.random.PRNGKey(seed)
    keep = jax.random.bernoulli(key, p=keep_prob, shape=(B, 1))
    scale = jnp.where(keep, jnp.float32(1.0 / keep_prob),
                      jnp.float32(0.0)).astype(x.dtype)

    # Lane-dense feature dim: pad to a multiple of 128 (sliced off afterwards).
    N_pad = ((N + 127) // 128) * 128
    if N_pad != N:
        x2 = jnp.pad(x2, ((0, 0), (0, N_pad - N)))

    # Sub-32-bit dtypes pack along sublanes: round row tiles accordingly.
    sublane = max(8, 32 // max(1, itemsize))

    vmem_cap = _vmem_capacity_bytes()
    # Bigger blocks amortize the ~0.35 us/step pipeline overhead; keep the
    # double-buffered (in + out = 4x block) budget inside this generation's VMEM.
    target_bytes = (16 * 1024 * 1024 if vmem_cap >= 100 * 1024 * 1024
                    else 6 * 1024 * 1024)

    # Feature tile (always a multiple of 128 or the full padded dim).
    if block_cols is None:
        tn = min(N_pad, 8192)
    else:
        tn = min(int(block_cols), N_pad)
        if tn < N_pad and tn % 128 != 0:
            tn = min(N_pad, ((tn + 127) // 128) * 128)
    tn = max(tn, min(N_pad, 128))

    # Batch tile.
    if block_rows is None:
        rows = max(sublane, target_bytes // max(1, tn * itemsize))
        rows = min(B, rows)
        if rows < B:
            rows = max(sublane, (rows // sublane) * sublane)
        tm = max(1, rows)
        # Keep >= 2 batch tiles when possible so "parallel" can shard the grid
        # across v7x's two TensorCores.
        if pl.cdiv(B, tm) < 2 and B >= 2 * sublane:
            half = -(-((B + 1) // 2) // sublane) * sublane
            if half < B:
                tm = half
    else:
        tm = min(int(block_rows), B)
        if tm < B and tm % 8 != 0:
            tm = min(B, ((tm + 7) // 8) * 8)
        tm = max(1, tm)

    grid = (pl.cdiv(B, tm), pl.cdiv(N_pad, tn))

    block_bytes = tm * tn * itemsize
    needed = 4 * block_bytes + (1 << 20)        # double-buffered in + out
    vmem_limit = int(min(max(needed, 32 * 1024 * 1024),
                         max(vmem_cap - 16 * 1024 * 1024, 32 * 1024 * 1024)))

    out = pl.pallas_call(
        _drop_path_kernel,
        out_shape=jax.ShapeDtypeStruct((B, N_pad), x.dtype),
        grid=grid,
        in_specs=[pl.BlockSpec((tm, tn), lambda i, j: (i, j)),
                  pl.BlockSpec((tm, 1), lambda i, j: (i, 0))],
        out_specs=pl.BlockSpec((tm, tn), lambda i, j: (i, j)),
        compiler_params=pltpu.CompilerParams(
            dimension_semantics=("parallel", "parallel"),
            vmem_limit_bytes=vmem_limit,
        ),
    )(x2, scale)

    if N_pad != N:
        out = out[:, :N]
    return out.reshape(x.shape)


if __name__ == "__main__":
    key = jax.random.PRNGKey(0)
    # Small Video-Swin-style activation tensor: (B, D, H, W, C).
    B, D, H, W, C = 4, 2, 8, 8, 16            # N = 2048 features per sample
    x = jax.random.normal(key, (B, D, H, W, C), dtype=jnp.float32)

    drop_prob = 0.25
    keep_prob = 1.0 - drop_prob

    # Production path: auto-derived (large, lane-dense) tiles.
    y = drop_path(x, drop_prob, training=True, seed=0)
    jax.block_until_ready(y)
    assert y.shape == x.shape and y.dtype == x.dtype

    # Semantics: every sample is either fully zeroed or scaled by 1/keep_prob.
    yf = y.reshape(B, -1)
    scaled = (x.astype(jnp.float32) / keep_prob).reshape(B, -1)
    row_is_zero = jnp.all(yf == 0.0, axis=1)
    row_is_kept = jnp.all(jnp.abs(yf - scaled) <= 1e-5, axis=1)
    assert bool(jnp.all(jnp.logical_or(row_is_zero, row_is_kept)))

    # Correctness-only check (NOT a perf configuration): small feature tiles
    # force multiple grid steps and must reproduce the exact same output,
    # since the per-sample scale is shared structurally across tiles.
    y_tiled = drop_path(x, drop_prob, training=True, seed=0, block_cols=128)
    jax.block_until_ready(y_tiled)
    assert jnp.array_equal(y, y_tiled)

    # Identity paths (drop_prob == 0 or eval mode) must return x unchanged.
    assert jnp.array_equal(drop_path(x, 0.0, training=True), x)
    assert jnp.array_equal(drop_path(x, drop_prob, training=False), x)

    print("KERNEL_OK")
</pallas_src>

<mosaic_0001>
module attributes {stable_mosaic.version = 11 : i64} {
  func.func @_drop_path_kernel(%arg0: i32, %arg1: i32, %arg2: memref<4x2048xf32, #tpu.memory_space<vmem>>, %arg3: memref<4x1xf32, #tpu.memory_space<vmem>>, %arg4: memref<4x2048xf32, #tpu.memory_space<vmem>>) attributes {dimension_semantics = [#tpu.dimension_semantics<parallel>, #tpu.dimension_semantics<parallel>], iteration_bounds = array<i64: 1, 1>, scalar_prefetch = 0 : i64, scratch_operands = 0 : i64, tpu.core_type = #tpu.core_type<tc>, window_params = [{transform_indices = @transform_0, window_bounds = array<i64: 4, 2048>}, {transform_indices = @transform_1, window_bounds = array<i64: 4, 1>}, {transform_indices = @transform_2, window_bounds = array<i64: 4, 2048>}]} {
    %c0 = arith.constant 0 : index
    %c0_0 = arith.constant 0 : index
    %0 = vector.load %arg2[%c0, %c0_0] : memref<4x2048xf32, #tpu.memory_space<vmem>>, vector<4x2048xf32>
    %c0_1 = arith.constant 0 : index
    %c0_2 = arith.constant 0 : index
    %1 = vector.load %arg3[%c0_1, %c0_2] : memref<4x1xf32, #tpu.memory_space<vmem>>, vector<4x1xf32>
    %2 = vector.broadcast %1 : vector<4x1xf32> to vector<4x2048xf32>
    %3 = arith.mulf %0, %2 : vector<4x2048xf32>
    %c0_3 = arith.constant 0 : index
    %c0_4 = arith.constant 0 : index
    %4 = vector.load %arg4[%c0_3, %c0_4] : memref<4x2048xf32, #tpu.memory_space<vmem>>, vector<4x2048xf32>
    tpu.vector_store %arg4[%c0_3, %c0_4], %3 {strides = array<i32>} : memref<4x2048xf32, #tpu.memory_space<vmem>>, vector<4x2048xf32>,
    return
  }
  func.func @transform_0(%arg0: i32, %arg1: i32) -> (i32, i32) {
    %c0_i32 = arith.constant 0 : i32
    return %arg0, %arg1 : i32, i32
  }
  func.func @transform_1(%arg0: i32, %arg1: i32) -> (i32, i32) {
    %c0_i32 = arith.constant 0 : i32
    %c0_i32_0 = arith.constant 0 : i32
    return %arg0, %c0_i32 : i32, i32
  }
  func.func @transform_2(%arg0: i32, %arg1: i32) -> (i32, i32) {
    %c0_i32 = arith.constant 0 : i32
    return %arg0, %arg1 : i32, i32
  }
}

</mosaic_0001>

<llo_original>
// kernel: tpu_custom_call.1
$region0: #{tpu_custom_call.1}
  #allocation0 [shape = 'u32[]', space=smem, size = 0x4, offset = 0x4, fixed_abs, tag = 'smem constant byte address 0x4 - core index']
  #allocation1 [shape = 'u32[72,128]{1,0:T(1,128)}', space=vmem, size = 0x9000, scoped, tag = 'internal scratch']
  %s0 = inlined_call_operand.hbm [shape: f32[4,2048], index: 0, kind: input, shape index: {}]
  %s1 = inlined_call_operand.vmem [shape: f32[4,1], index: 1, kind: input, shape index: {}]
  %s2 = inlined_call_operand.hbm [shape: f32[4,2048], index: 2, kind: output, shape index: {}]
  %s3 = sld [smem:[#allocation0]]
  $region22: #{tpu_custom_call.1} parent=0
    _
  %s5 = ssub.s32 1, %s3
  %s6 = scalar_select 0, %s5, %s3
  $region1: #{tpu_custom_call.1} parent=0
    #allocation2 [shape = 'u8[32768]{0}', space=vmem, size = 0x8000, scoped, tag = 'input window, operand 0, single buffered']
    #allocation3 [shape = 's32[1]{0}', space=sflag, size = 0x4, scoped, tag = 'scoped memory for tpu_custom_call.1']
    #allocation4 [shape = 's32[1]{0}', space=sflag, size = 0x4, scoped, tag = 'scoped memory for tpu_custom_call.1']
    #allocation5 [shape = 'u8[32768]{0}', space=vmem, size = 0x8000, scoped, tag = 'output window, operand 0, single buffered']
    %7 = vsyncpa [#allocation3], 0
    %8 = vsyncpa [#allocation4], 0
    // Predicated region
    $region2: #{tpu_custom_call.1} parent=1 // pred_check
      _
    $region3: #{tpu_custom_call.1} parent=1 // pred_check_branch
      %10 = sbr.rel (0) target = $region5
    $region4: #{tpu_custom_call.1} parent=1 // pred_region
      %12 = vsyncadd [#allocation3], 0
      %s14 = sshll.u32 %s0, 4
      %s15 = int_to_ptr.hbm [resolvable:$true] %s14
      %s16 = sshll.u32 [#allocation2], 4
      %s17 = int_to_ptr.vmem [resolvable:$true] %s16
      %19 = dma.hbm_to_vmem [thread:$0]  %s15, 1024, %s17, [#allocation3]
    $region5: #{tpu_custom_call.1} parent=1 // pred_fallthru
      _
    // Predicated region
    $region6: #{tpu_custom_call.1} parent=1 // pred_check
      _
    $region7: #{tpu_custom_call.1} parent=1 // pred_check_branch
      %21 = sbr.rel (0) target = $region9
    $region8: #{tpu_custom_call.1} parent=1 // pred_region
      _
    $region9: #{tpu_custom_call.1} parent=1 // pred_fallthru
      _
    // Predicated region
    $region10: #{tpu_custom_call.1} parent=1 // pred_check
      _
    $region11: #{tpu_custom_call.1} parent=1 // pred_check_branch
      %23 = sbr.rel (0) target = $region13
    $region12: #{tpu_custom_call.1} parent=1 // pred_region
      %25 = dma.done [#allocation3], 1024
    $region13: #{tpu_custom_call.1} parent=1 // pred_fallthru
      _
    %v26 = vld [vmem:[#allocation2] sm:$0xff]
    %v27 = vld [vmem:[#allocation2 + $0x8] sm:$0xff]
    %v28 = vld [vmem:[#allocation2 + $0x10] sm:$0xff]
    %v29 = vld [vmem:[#allocation2 + $0x18] sm:$0xff]
    %v30 = vld [vmem:[#allocation2 + $0x20] sm:$0xff]
    %v31 = vld [vmem:[#allocation2 + $0x28] sm:$0xff]
    %v32 = vld [vmem:[#allocation2 + $0x30] sm:$0xff]
    %v33 = vld [vmem:[#allocation2 + $0x38] sm:$0xff]
    %v34 = vld [vmem:[%s1] sm:$0xf]
    %36 = vset.pattern.permute.xlu0 0
    %37 = vperm.xlu0 %36, %v34
    %v38 = vpop.permute.xlu0 %37
    %v40 = vunpack.c.l.s4 839922192
    %v41 = vunpack.c.0.s8 %v40
    %v42 = vperm.slane %v38, %v41
    %v44 = vmul.f32 %v26, %v42
    %v45 = vmul.f32 %v27, %v42
    %v46 = vmul.f32 %v28, %v42
    %v47 = vmul.f32 %v29, %v42
    %v48 = vmul.f32 %v30, %v42
    %v49 = vmul.f32 %v31, %v42
    %v50 = vmul.f32 %v32, %v42
    %v51 = vmul.f32 %v33, %v42
    %52 = vst [vmem:[#allocation5] sm:$0xff] %v44
    %53 = vst [vmem:[#allocation5 + $0x8] sm:$0xff] %v45
    %54 = vst [vmem:[#allocation5 + $0x10] sm:$0xff] %v46
    %55 = vst [vmem:[#allocation5 + $0x18] sm:$0xff] %v47
    %56 = vst [vmem:[#allocation5 + $0x20] sm:$0xff] %v48
    %57 = vst [vmem:[#allocation5 + $0x28] sm:$0xff] %v49
    %58 = vst [vmem:[#allocation5 + $0x30] sm:$0xff] %v50
    %59 = vst [vmem:[#allocation5 + $0x38] sm:$0xff] %v51
    // Predicated region
    $region14: #{tpu_custom_call.1} parent=1 // pred_check
      _
    $region15: #{tpu_custom_call.1} parent=1 // pred_check_branch
      %61 = sbr.rel (0) target = $region17
    $region16: #{tpu_custom_call.1} parent=1 // pred_region
      %63 = vsyncadd [#allocation4], 0
      %s65 = sshll.u32 [#allocation5], 4
      %s66 = int_to_ptr.vmem [resolvable:$true] %s65
      %s67 = sshll.u32 %s2, 4
      %s68 = int_to_ptr.hbm [resolvable:$true] %s67
      %70 = dma.vmem_to_hbm [thread:$0]  %s66, 1024, %s68, [#allocation4]
    $region17: #{tpu_custom_call.1} parent=1 // pred_fallthru
      _
    // Predicated region
    $region18: #{tpu_custom_call.1} parent=1 // pred_check
      _
    $region19: #{tpu_custom_call.1} parent=1 // pred_check_branch
      %72 = sbr.rel (0) target = $region21
    $region20: #{tpu_custom_call.1} parent=1 // pred_region
      %74 = dma.done [#allocation4], 1024
    $region21: #{tpu_custom_call.1} parent=1 // pred_fallthru
      _
    %75 = vsyncpa [#allocation3], 1
    %76 = vsyncpa [#allocation4], 1

</llo_original>
